<compile_context>
chip_gen: v5e
topology: v5e:2x2
jax: 0.10.0
libtpu: 0.0.40
codegen_flags: <defaults>
</compile_context>

<pallas_src>
import jax
import jax.numpy as jnp
from jax.experimental import pallas as pl
from jax.experimental.pallas import tpu as pltpu

_LANE = 128


def _policy_kernel(x_ref, w1_ref, b1_ref, w2_ref, b2_ref, w3_ref, b3_ref, o_ref):
    # Feature-major: x is (8, TB) bf16; batch sits on the lane axis.
    x = x_ref[...]                                                          # (8, TB)

    # fc1 + tanh : (16,8)@(8,TB) -> (16,TB), f32 accumulation on the MXU.
    # Bias-add epilogue + tanh in bf16 (halves EUP work / vreg footprint).
    h = jnp.dot(w1_ref[...], x, preferred_element_type=jnp.float32) + b1_ref[...]
    h = jnp.tanh(h.astype(jnp.bfloat16))                                    # (16, TB) bf16

    # fc2 + tanh
    h = jnp.dot(w2_ref[...], h, preferred_element_type=jnp.float32) + b2_ref[...]
    h = jnp.tanh(h.astype(jnp.bfloat16))                                    # (16, TB) bf16

    # fc3
    logits = jnp.dot(w3_ref[...], h, preferred_element_type=jnp.float32) + b3_ref[...]  # (4, TB)

    # Numerically stable softmax over the 4 actions (sublane axis).
    m = jnp.max(logits, axis=0, keepdims=True)                              # (1, TB)
    e = jnp.exp(logits - m)
    denom = jnp.sum(e, axis=0, keepdims=True)
    # Exact reciprocal (still EUP-cheap) so probabilities sum to 1 at f32 accuracy.
    o_ref[...] = e * pl.reciprocal(denom, approx=False)                     # (4, TB)


def policy_gradient_forward(state, params, *, tile_b=32768, action_major=False):
    """state: (B, 8) float32 -> (B, 4) action probabilities.

    tile_b: batch-tile width (multiple of 128).  32768 default keeps the
    HBM-bound kernel near roofline while fitting v7x / v5e VMEM limits; v6e
    can go to 65536+ if desired.
    """
    B, S = state.shape
    assert S == 8
    assert tile_b % _LANE == 0

    # Batch tile: multiple of 128 lanes, capped at tile_b for small batches.
    tb = min(tile_b, pl.cdiv(B, _LANE) * _LANE)
    grid = (pl.cdiv(B, tb),)   # ragged last block; tail columns are discarded

    # Single fused HBM pre-pass: feature-major (8, B) and bf16 cast.
    x_t = state.T.astype(jnp.bfloat16)          # (8, B)

    # Transpose weights once and cast to bf16 for the MXU; biases become
    # (out, 1) columns so the bias add broadcasts along lanes.
    w1t = params["w1"].T.astype(jnp.bfloat16)   # (16, 8)
    w2t = params["w2"].T.astype(jnp.bfloat16)   # (16, 16)
    w3t = params["w3"].T.astype(jnp.bfloat16)   # (4, 16)
    b1c = params["b1"].T.astype(jnp.float32)    # (16, 1)
    b2c = params["b2"].T.astype(jnp.float32)    # (16, 1)
    b3c = params["b3"].T.astype(jnp.float32)    # (4, 1)

    # Weights/biases: full-array blocks with a constant index_map -> stay
    # resident in VMEM across all batch tiles (not re-DMA'd per step).
    resident = lambda shape: pl.BlockSpec(shape, lambda i: (0, 0))

    out_t = pl.pallas_call(
        _policy_kernel,
        out_shape=jax.ShapeDtypeStruct((4, B), jnp.float32),
        grid=grid,
        in_specs=[
            pl.BlockSpec((8, tb), lambda i: (0, i)),      # state tile (pipelined)
            resident(w1t.shape), resident(b1c.shape),
            resident(w2t.shape), resident(b2c.shape),
            resident(w3t.shape), resident(b3c.shape),
        ],
        out_specs=pl.BlockSpec((4, tb), lambda i: (0, i)),  # lane-dense stores
        compiler_params=pltpu.CompilerParams(
            dimension_semantics=("parallel",),   # megacore-shardable on v7x
            vmem_limit_bytes=48 << 20,           # > v5e 16 MiB default, < v7x 64 MiB physical
        ),
    )(x_t, w1t, b1c, w2t, b2c, w3t, b3c)

    if action_major:
        # (4, B) lane-dense output; consumer can fuse its own transpose.
        return out_t
    return out_t.T   # (B, 4) to match the PyTorch module orientation


def init_params(key):
    """Deterministic init mimicking nn.Linear default (U[-1/sqrt(fan_in), +1/sqrt(fan_in)])."""
    def linear(key, fan_in, fan_out):
        kw, kb = jax.random.split(key)
        bound = 1.0 / jnp.sqrt(fan_in)
        w = jax.random.uniform(kw, (fan_in, fan_out), jnp.float32, -bound, bound)
        b = jax.random.uniform(kb, (1, fan_out), jnp.float32, -bound, bound)
        return w, b

    k1, k2, k3 = jax.random.split(key, 3)
    w1, b1 = linear(k1, 8, 16)
    w2, b2 = linear(k2, 16, 16)
    w3, b3 = linear(k3, 16, 4)
    return {"w1": w1, "b1": b1, "w2": w2, "b2": b2, "w3": w3, "b3": b3}


def reference_forward(state, p):
    h = jnp.tanh(state @ p["w1"] + p["b1"])
    h = jnp.tanh(h @ p["w2"] + p["b2"])
    logits = h @ p["w3"] + p["b3"]
    return jax.nn.softmax(logits, axis=-1)


if __name__ == "__main__":
    key = jax.random.PRNGKey(0)
    kparam, kstate, kbig = jax.random.split(key, 3)
    params = init_params(kparam)

    # Small shape consistent with the module: batch=2, state_dim=8.
    state = jax.random.normal(kstate, (2, 8), jnp.float32)
    out = jax.block_until_ready(policy_gradient_forward(state, params))
    ref = reference_forward(state, params)
    assert out.shape == (2, 4)
    # Probabilities sum to 1 (exact reciprocal keeps this tight).
    assert jnp.allclose(jnp.sum(out, axis=-1), 1.0, atol=1e-3)
    # bf16 matmul operands + bf16 tanh -> loosened tolerances vs f32 reference.
    assert jnp.allclose(out, ref, atol=2e-2, rtol=2e-2)

    # Exercise the multi-tile parallel grid and the ragged last block
    # (B=300, tile=128 -> 3 tiles, last one partial; no explicit padding).
    state_big = jax.random.normal(kbig, (300, 8), jnp.float32)
    out_big = jax.block_until_ready(
        policy_gradient_forward(state_big, params, tile_b=128))
    ref_big = reference_forward(state_big, params)
    assert out_big.shape == (300, 4)
    assert jnp.allclose(out_big, ref_big, atol=2e-2, rtol=2e-2)
    assert jnp.allclose(jnp.sum(out_big, axis=-1), 1.0, atol=1e-3)

    # Action-major path (lets a consumer fuse / skip the final transpose).
    out_am = jax.block_until_ready(
        policy_gradient_forward(state_big, params, tile_b=128, action_major=True))
    assert out_am.shape == (4, 300)
    assert jnp.allclose(out_am.T, ref_big, atol=2e-2, rtol=2e-2)

    print("KERNEL_OK")
</pallas_src>

<mosaic_0001>
module attributes {stable_mosaic.version = 11 : i64} {
  func.func @_policy_kernel(%arg0: i32, %arg1: memref<8x128xbf16, #tpu.memory_space<vmem>>, %arg2: memref<16x8xbf16, #tpu.memory_space<vmem>>, %arg3: memref<16x1xf32, #tpu.memory_space<vmem>>, %arg4: memref<16x16xbf16, #tpu.memory_space<vmem>>, %arg5: memref<16x1xf32, #tpu.memory_space<vmem>>, %arg6: memref<4x16xbf16, #tpu.memory_space<vmem>>, %arg7: memref<4x1xf32, #tpu.memory_space<vmem>>, %arg8: memref<4x128xf32, #tpu.memory_space<vmem>>) attributes {dimension_semantics = [#tpu.dimension_semantics<parallel>], iteration_bounds = array<i64: 1>, scalar_prefetch = 0 : i64, scratch_operands = 0 : i64, tpu.core_type = #tpu.core_type<tc>, window_params = [{transform_indices = @transform_0, window_bounds = array<i64: 8, 128>}, {pipeline_mode = #tpu.pipeline_mode<synchronous>, transform_indices = @transform_1, window_bounds = array<i64: 16, 8>}, {pipeline_mode = #tpu.pipeline_mode<synchronous>, transform_indices = @transform_2, window_bounds = array<i64: 16, 1>}, {pipeline_mode = #tpu.pipeline_mode<synchronous>, transform_indices = @transform_3, window_bounds = array<i64: 16, 16>}, {pipeline_mode = #tpu.pipeline_mode<synchronous>, transform_indices = @transform_4, window_bounds = array<i64: 16, 1>}, {pipeline_mode = #tpu.pipeline_mode<synchronous>, transform_indices = @transform_5, window_bounds = array<i64: 4, 16>}, {pipeline_mode = #tpu.pipeline_mode<synchronous>, transform_indices = @transform_6, window_bounds = array<i64: 4, 1>}, {transform_indices = @transform_7, window_bounds = array<i64: 4, 128>}]} {
    %c0 = arith.constant 0 : index
    %c0_0 = arith.constant 0 : index
    %0 = vector.load %arg1[%c0, %c0_0] : memref<8x128xbf16, #tpu.memory_space<vmem>>, vector<8x128xbf16>
    %c0_1 = arith.constant 0 : index
    %c0_2 = arith.constant 0 : index
    %1 = vector.load %arg2[%c0_1, %c0_2] : memref<16x8xbf16, #tpu.memory_space<vmem>>, vector<16x8xbf16>
    %cst = arith.constant dense<0.000000e+00> : vector<16x128xf32>
    %2 = tpu.matmul %1, %0, %cst {dimension_numbers = #tpu.dot_dimension_numbers<[1], [0], [0], [1], [0, 0, 1, 1], [], []>} : vector<16x8xbf16>, vector<8x128xbf16>, vector<16x128xf32> -> vector<16x128xf32>
    %c0_3 = arith.constant 0 : index
    %c0_4 = arith.constant 0 : index
    %3 = vector.load %arg3[%c0_3, %c0_4] : memref<16x1xf32, #tpu.memory_space<vmem>>, vector<16x1xf32>
    %4 = vector.broadcast %3 : vector<16x1xf32> to vector<16x128xf32>
    %5 = arith.addf %2, %4 : vector<16x128xf32>
    %6 = arith.truncf %5 : vector<16x128xf32> to vector<16x128xbf16>
    %7 = math.tanh %6 : vector<16x128xbf16>
    %c0_5 = arith.constant 0 : index
    %c0_6 = arith.constant 0 : index
    %8 = vector.load %arg4[%c0_5, %c0_6] : memref<16x16xbf16, #tpu.memory_space<vmem>>, vector<16x16xbf16>
    %cst_7 = arith.constant dense<0.000000e+00> : vector<16x128xf32>
    %9 = tpu.matmul %8, %7, %cst_7 {dimension_numbers = #tpu.dot_dimension_numbers<[1], [0], [0], [1], [0, 0, 1, 1], [], []>} : vector<16x16xbf16>, vector<16x128xbf16>, vector<16x128xf32> -> vector<16x128xf32>
    %c0_8 = arith.constant 0 : index
    %c0_9 = arith.constant 0 : index
    %10 = vector.load %arg5[%c0_8, %c0_9] : memref<16x1xf32, #tpu.memory_space<vmem>>, vector<16x1xf32>
    %11 = vector.broadcast %10 : vector<16x1xf32> to vector<16x128xf32>
    %12 = arith.addf %9, %11 : vector<16x128xf32>
    %13 = arith.truncf %12 : vector<16x128xf32> to vector<16x128xbf16>
    %14 = math.tanh %13 : vector<16x128xbf16>
    %c0_10 = arith.constant 0 : index
    %c0_11 = arith.constant 0 : index
    %15 = vector.load %arg6[%c0_10, %c0_11] : memref<4x16xbf16, #tpu.memory_space<vmem>>, vector<4x16xbf16>
    %cst_12 = arith.constant dense<0.000000e+00> : vector<4x128xf32>
    %16 = tpu.matmul %15, %14, %cst_12 {dimension_numbers = #tpu.dot_dimension_numbers<[1], [0], [0], [1], [0, 0, 1, 1], [], []>} : vector<4x16xbf16>, vector<16x128xbf16>, vector<4x128xf32> -> vector<4x128xf32>
    %c0_13 = arith.constant 0 : index
    %c0_14 = arith.constant 0 : index
    %17 = vector.load %arg7[%c0_13, %c0_14] : memref<4x1xf32, #tpu.memory_space<vmem>>, vector<4x1xf32>
    %18 = vector.broadcast %17 : vector<4x1xf32> to vector<4x128xf32>
    %19 = arith.addf %16, %18 : vector<4x128xf32>
    %cst_15 = arith.constant dense<0xFF800000> : vector<128xf32>
    %20 = vector.multi_reduction <maximumf>, %19, %cst_15 [0] : vector<4x128xf32> to vector<128xf32>
    %21 = vector.shape_cast %20 : vector<128xf32> to vector<1x128xf32>
    %22 = vector.broadcast %21 : vector<1x128xf32> to vector<4x128xf32>
    %23 = arith.subf %19, %22 : vector<4x128xf32>
    %24 = math.exp %23 : vector<4x128xf32>
    %cst_16 = arith.constant dense<0.000000e+00> : vector<128xf32>
    %25 = vector.multi_reduction <add>, %24, %cst_16 [0] : vector<4x128xf32> to vector<128xf32>
    %26 = vector.shape_cast %25 : vector<128xf32> to vector<1x128xf32>
    %27 = tpu.reciprocal %26 : vector<1x128xf32> -> vector<1x128xf32>
    %28 = vector.broadcast %27 : vector<1x128xf32> to vector<4x128xf32>
    %29 = arith.mulf %24, %28 : vector<4x128xf32>
    %c0_17 = arith.constant 0 : index
    %c0_18 = arith.constant 0 : index
    %30 = vector.load %arg8[%c0_17, %c0_18] : memref<4x128xf32, #tpu.memory_space<vmem>>, vector<4x128xf32>
    tpu.vector_store %arg8[%c0_17, %c0_18], %29 {strides = array<i32>} : memref<4x128xf32, #tpu.memory_space<vmem>>, vector<4x128xf32>,
    return
  }
  func.func @transform_0(%arg0: i32) -> (i32, i32) {
    %c0_i32 = arith.constant 0 : i32
    %c0_i32_0 = arith.constant 0 : i32
    return %c0_i32, %arg0 : i32, i32
  }
  func.func @transform_1(%arg0: i32) -> (i32, i32) {
    %c0_i32 = arith.constant 0 : i32
    %c0_i32_0 = arith.constant 0 : i32
    %c0_i32_1 = arith.constant 0 : i32
    return %c0_i32, %c0_i32_0 : i32, i32
  }
  func.func @transform_2(%arg0: i32) -> (i32, i32) {
    %c0_i32 = arith.constant 0 : i32
    %c0_i32_0 = arith.constant 0 : i32
    %c0_i32_1 = arith.constant 0 : i32
    return %c0_i32, %c0_i32_0 : i32, i32
  }
  func.func @transform_3(%arg0: i32) -> (i32, i32) {
    %c0_i32 = arith.constant 0 : i32
    %c0_i32_0 = arith.constant 0 : i32
    %c0_i32_1 = arith.constant 0 : i32
    return %c0_i32, %c0_i32_0 : i32, i32
  }
  func.func @transform_4(%arg0: i32) -> (i32, i32) {
    %c0_i32 = arith.constant 0 : i32
    %c0_i32_0 = arith.constant 0 : i32
    %c0_i32_1 = arith.constant 0 : i32
    return %c0_i32, %c0_i32_0 : i32, i32
  }
  func.func @transform_5(%arg0: i32) -> (i32, i32) {
    %c0_i32 = arith.constant 0 : i32
    %c0_i32_0 = arith.constant 0 : i32
    %c0_i32_1 = arith.constant 0 : i32
    return %c0_i32, %c0_i32_0 : i32, i32
  }
  func.func @transform_6(%arg0: i32) -> (i32, i32) {
    %c0_i32 = arith.constant 0 : i32
    %c0_i32_0 = arith.constant 0 : i32
    %c0_i32_1 = arith.constant 0 : i32
    return %c0_i32, %c0_i32_0 : i32, i32
  }
  func.func @transform_7(%arg0: i32) -> (i32, i32) {
    %c0_i32 = arith.constant 0 : i32
    %c0_i32_0 = arith.constant 0 : i32
    return %c0_i32, %arg0 : i32, i32
  }
}

</mosaic_0001>

<llo_original>
// kernel: tpu_custom_call.1
$region0: #{tpu_custom_call.1}
  #allocation0 [shape = 'u32[]', space=smem, size = 0x4, offset = 0x4, fixed_abs, tag = 'smem constant byte address 0x4 - core index']
  #allocation1 [shape = 'u32[72,128]{1,0:T(1,128)}', space=vmem, size = 0x9000, scoped, tag = 'internal scratch']
  %s0 = inlined_call_operand.vmem [shape: bf16[8,2], index: 0, kind: input, shape index: {}]
  %s1 = inlined_call_operand.vmem [shape: bf16[16,8], index: 1, kind: input, shape index: {}]
  %s2 = inlined_call_operand.vmem [shape: f32[16,1], index: 2, kind: input, shape index: {}]
  %s3 = inlined_call_operand.vmem [shape: bf16[16,16], index: 3, kind: input, shape index: {}]
  %s4 = inlined_call_operand.vmem [shape: f32[16,1], index: 4, kind: input, shape index: {}]
  %s5 = inlined_call_operand.vmem [shape: bf16[4,16], index: 5, kind: input, shape index: {}]
  %s6 = inlined_call_operand.vmem [shape: f32[4,1], index: 6, kind: input, shape index: {}]
  %s7 = inlined_call_operand.vmem [shape: f32[4,2], index: 7, kind: output, shape index: {}]
  %s8 = sld [smem:[#allocation0]]
  $region38: #{tpu_custom_call.1} parent=0
    _
  %s10 = ssub.s32 1, %s8
  %s11 = scalar_select 0, %s10, %s8
  // Predicated region
  $region2: #{tpu_custom_call.1} parent=0 // pred_check
    _
  $region3: #{tpu_custom_call.1} parent=0 // pred_check_branch
    %13 = sbr.rel (0) target = $region5
  $region4: #{tpu_custom_call.1} parent=0 // pred_region
    _
  $region5: #{tpu_custom_call.1} parent=0 // pred_fallthru
    _
  // Predicated region
  $region6: #{tpu_custom_call.1} parent=0 // pred_check
    _
  $region7: #{tpu_custom_call.1} parent=0 // pred_check_branch
    %15 = sbr.rel (0) target = $region9
  $region8: #{tpu_custom_call.1} parent=0 // pred_region
    _
  $region9: #{tpu_custom_call.1} parent=0 // pred_fallthru
    _
  // Predicated region
  $region10: #{tpu_custom_call.1} parent=0 // pred_check
    _
  $region11: #{tpu_custom_call.1} parent=0 // pred_check_branch
    %17 = sbr.rel (0) target = $region13
  $region12: #{tpu_custom_call.1} parent=0 // pred_region
    _
  $region13: #{tpu_custom_call.1} parent=0 // pred_fallthru
    _
  // Predicated region
  $region14: #{tpu_custom_call.1} parent=0 // pred_check
    _
  $region15: #{tpu_custom_call.1} parent=0 // pred_check_branch
    %19 = sbr.rel (0) target = $region17
  $region16: #{tpu_custom_call.1} parent=0 // pred_region
    _
  $region17: #{tpu_custom_call.1} parent=0 // pred_fallthru
    _
  // Predicated region
  $region18: #{tpu_custom_call.1} parent=0 // pred_check
    _
  $region19: #{tpu_custom_call.1} parent=0 // pred_check_branch
    %21 = sbr.rel (0) target = $region21
  $region20: #{tpu_custom_call.1} parent=0 // pred_region
    _
  $region21: #{tpu_custom_call.1} parent=0 // pred_fallthru
    _
  // Predicated region
  $region22: #{tpu_custom_call.1} parent=0 // pred_check
    _
  $region23: #{tpu_custom_call.1} parent=0 // pred_check_branch
    %23 = sbr.rel (0) target = $region25
  $region24: #{tpu_custom_call.1} parent=0 // pred_region
    _
  $region25: #{tpu_custom_call.1} parent=0 // pred_fallthru
    _
  // Predicated region
  $region26: #{tpu_custom_call.1} parent=0 // pred_check
    _
  $region27: #{tpu_custom_call.1} parent=0 // pred_check_branch
    %25 = sbr.rel (0) target = $region29
  $region28: #{tpu_custom_call.1} parent=0 // pred_region
    _
  $region29: #{tpu_custom_call.1} parent=0 // pred_fallthru
    _
  %v27 = vld [vmem:[%s0] sm:$0xf]
  %v28 = vld [vmem:[%s1] sm:$0xf]
  %v29 = vld [vmem:[%s1 + $0x4] sm:$0xf]
  %v30 = vld [vmem:[%s2] sm:$0xff]
  %v31 = vld [vmem:[%s2 + $0x8] sm:$0xff]
  %33 = vset.pattern.permute.xlu0 0
  %34 = vperm.xlu0 %33, %v30
  %v35 = vpop.permute.xlu0 %34
  %38 = vset.pattern.permute.xlu0 0
  %39 = vperm.xlu0 %38, %v31
  %v40 = vpop.permute.xlu0 %39
  %v44 = vunpack.c.l.b16 %v28
  %v45 = vunpack.c.l.b16 %v29
  %v46 = vpack.c.b16 %v45, %v44
  %vm47 = vcmask 64512
  %v49 = vsel %vm47, %v46, 0
  %vm51 = vcmask 1043456
  %v53 = vsel %vm51, %v27, 0
  %55 = vmatpush.bf16.msra.mxu0 0
  %56 = vmatpush.bf16.msra.mxu0 0
  %57 = vmatpush.bf16.msra.mxu0 0
  %58 = vmatpush.bf16.msra.mxu0 0
  %59 = vmatpush.bf16.msra.mxu0 0
  %60 = vmatpush.bf16.msra.mxu0 0
  %61 = vmatpush.bf16.msra.mxu0 0
  %62 = vmatpush.bf16.msra.mxu0 %v53
  %63 = vmatmul.bf16.gmra.mxu0 %v49
  %v64 = vpop.f32.mrf.mxu0
  %v65 = vadd.f32 %v35, %v64
  %v66 = vpop.f32.mrf.mxu0
  %v67 = vadd.f32 %v40, %v66
  %68 = vdwg.mxu0
  %v69 = vpack.c.bf16 %v67, %v65
  %v70 = vunpack.c.l.bf16 %v69
  %v71 = vunpack.c.h.bf16 %v69
  %v72 = vtanh.pop %v70
  %v73 = vtanh.pop %v71
  %v74 = vpack.c.bf16 %v73, %v72
  %v75 = vld [vmem:[%s3] sm:$0xf]
  %v76 = vld [vmem:[%s3 + $0x4] sm:$0xf]
  %v77 = vld [vmem:[%s4] sm:$0xff]
  %v78 = vld [vmem:[%s4 + $0x8] sm:$0xff]
  %80 = vset.pattern.permute.xlu0 0
  %81 = vperm.xlu0 %80, %v77
  %v82 = vpop.permute.xlu0 %81
  %85 = vset.pattern.permute.xlu0 0
  %86 = vperm.xlu0 %85, %v78
  %v87 = vpop.permute.xlu0 %86
  %v91 = vunpack.c.l.b16 %v75
  %v92 = vunpack.c.l.b16 %v76
  %v93 = vpack.c.b16 %v92, %v91
  %vm94 = vcmask 130048
  %v96 = vsel %vm94, %v93, 0
  %98 = vmatpush.bf16.msra.mxu0 0
  %99 = vmatpush.bf16.msra.mxu0 0
  %100 = vmatpush.bf16.msra.mxu0 0
  %101 = vmatpush.bf16.msra.mxu0 0
  %102 = vmatpush.bf16.msra.mxu0 0
  %103 = vmatpush.bf16.msra.mxu0 0
  %104 = vmatpush.bf16.msra.mxu0 0
  %105 = vmatpush.bf16.msra.mxu0 %v74
  %106 = vmatmul.bf16.gmra.mxu0 %v96
  %v107 = vpop.f32.mrf.mxu0
  %v108 = vadd.f32 %v82, %v107
  %v109 = vpop.f32.mrf.mxu0
  %v110 = vadd.f32 %v87, %v109
  %111 = vdwg.mxu0
  %v112 = vpack.c.bf16 %v110, %v108
  %v113 = vunpack.c.l.bf16 %v112
  %v114 = vunpack.c.h.bf16 %v112
  %v115 = vtanh.pop %v113
  %v116 = vtanh.pop %v114
  %v117 = vpack.c.bf16 %v116, %v115
  %v118 = vld [vmem:[%s5] sm:$0x3]
  %v119 = vld [vmem:[%s6] sm:$0xf]
  %121 = vset.pattern.permute.xlu0 0
  %122 = vperm.xlu0 %121, %v119
  %v123 = vpop.permute.xlu0 %122
  %v126 = vsel %vm94, %v118, 0
  %128 = vmatpush.bf16.msra.mxu0 0
  %129 = vmatpush.bf16.msra.mxu0 0
  %130 = vmatpush.bf16.msra.mxu0 0
  %131 = vmatpush.bf16.msra.mxu0 0
  %132 = vmatpush.bf16.msra.mxu0 0
  %133 = vmatpush.bf16.msra.mxu0 0
  %134 = vmatpush.bf16.msra.mxu0 0
  %135 = vmatpush.bf16.msra.mxu0 %v117
  %136 = vmatmul.bf16.gmra.mxu0 %v126
  %v137 = vpop.f32.mrf.mxu0
  %v138 = vadd.f32 %v123, %v137
  %v139 = vpop.f32.mrf.mxu0
  %140 = vdwg.mxu0
  %v141 = vsel %vm51, %v138, -inf
  %v142 = vrot.slane %v141, 4
  %v143 = vmax.f32 %v141, %v142
  %v144 = vrot.slane %v143, 2
  %v145 = vmax.f32 %v143, %v144
  %v146 = vrot.slane %v145, 1
  %v147 = vmax.f32 %v145, %v146
  %v148 = vsub.f32 %v138, %v147
  %v149 = vmul.f32 %v148, 1.442695
  %v150 = vpow.pop %v149
  %v151 = vsel %vm51, %v150, 0.0
  %v152 = vrot.slane %v151, 4
  %v153 = vadd.f32 %v151, %v152
  %v154 = vrot.slane %v153, 2
  %v155 = vadd.f32 %v153, %v154
  %v156 = vrot.slane %v155, 1
  %v157 = vadd.f32 %v155, %v156
  %v158 = vrcp.pop %v157
  %v159 = vmul.f32 %v157, %v158
  %v160 = vsub.f32 1.0, %v159
  %v161 = vmul.f32 %v158, %v160
  %v162 = vadd.f32 %v158, %v161
  %vm163 = vweird.f32 %v157
  %vm164 = vweird.f32 %v158
  %vm165 = vmor %vm163, %vm164
  %v166 = vsel %vm165, %v158, %v162
  %v167 = vand.u32 2147483647, %v157
  %vm168 = vcmp.eq.f32.partialorder %v167, 8.507059e+37
  %v169 = vand.u32 %v157, 2147483648
  %v170 = vor.u32 1.1754944e-38, %v169
  %v171 = vsel %vm168, %v170, %v166
  %v172 = vmul.f32 %v150, %v171
  %173 = vst [vmem:[%s7] sm:$0xf] %v172
  // Predicated region
  $region30: #{tpu_custom_call.1} parent=0 // pred_check
    _
  $region31: #{tpu_custom_call.1} parent=0 // pred_check_branch
    %175 = sbr.rel (0) target = $region33
  $region32: #{tpu_custom_call.1} parent=0 // pred_region
    _
  $region33: #{tpu_custom_call.1} parent=0 // pred_fallthru
    _
  // Predicated region
  $region34: #{tpu_custom_call.1} parent=0 // pred_check
    _
  $region35: #{tpu_custom_call.1} parent=0 // pred_check_branch
    %177 = sbr.rel (0) target = $region37
  $region36: #{tpu_custom_call.1} parent=0 // pred_region
    _
  $region37: #{tpu_custom_call.1} parent=0 // pred_fallthru
    _

</llo_original>
